<compile_context>
chip_gen: v7x
topology: tpu7x:2x2x1
jax: 0.10.0
libtpu: 0.0.40
codegen_flags: <defaults>
</compile_context>

<pallas_src>
import functools

import jax
import jax.numpy as jnp
from jax.experimental import pallas as pl
from jax.experimental.pallas import tpu as pltpu


def _round_up(x, m):
    return ((x + m - 1) // m) * m


def _mlp_kernel(y_ref,                      # (2, bn)   features x batch, f32
                w1_ref, b1_ref,             # (16, 2) f32, (16, 1) f32
                w2_ref, b2_ref,             # (16, 16) hidden_dtype, (16, 1) f32
                w3_ref, b3_ref,             # (16, 16) hidden_dtype, (16, 1) f32
                w4_ref, b4_ref,             # (2, 16) hidden_dtype, (2, 1) f32
                o_ref):                     # (2, bn)  f32
    hdt = w2_ref.dtype                      # hidden/tanh compute dtype (f32 or bf16)
    y = y_ref[...]                          # (2, bn)

    # Layer 1 (2 -> 16): MXU (contraction 2, f32 accumulate), tanh in hidden dtype.
    z = jnp.dot(w1_ref[...], y, preferred_element_type=jnp.float32) + b1_ref[...]
    h = jnp.tanh(z.astype(hdt))             # (16, bn)

    # Layers 2 & 3 (16 -> 16): MXU matmuls, f32 accumulation, batch lane-dense on RHS.
    z = jnp.dot(w2_ref[...], h, preferred_element_type=jnp.float32) + b2_ref[...]
    h = jnp.tanh(z.astype(hdt))
    z = jnp.dot(w3_ref[...], h, preferred_element_type=jnp.float32) + b3_ref[...]
    h = jnp.tanh(z.astype(hdt))

    # Layer 4 (16 -> 2): also MXU -- no XLU sublane reductions, no concatenate.
    out = jnp.dot(w4_ref[...], h, preferred_element_type=jnp.float32) + b4_ref[...]
    o_ref[...] = out.astype(o_ref.dtype)    # (2, bn) lane-dense store


@functools.partial(jax.jit, static_argnames=("block_cols", "hidden_dtype"))
def dudt_forward_colmajor(t, y_cm, params, *, block_cols=32768,
                          hidden_dtype=jnp.float32):
    """Forward pass on features-major input.  y_cm: [2, N] f32 -> [2, N] f32.

    t is ignored (matches the PyTorch module).  Preferred entry point when the
    caller can keep the ODE state in (2, N) layout (no whole-batch transposes).
    """
    del t  # unused, same as the reference module
    fin, n = y_cm.shape
    assert fin == 2
    assert block_cols >= 1

    # Lane-aligned block (multiple of 128); pad the batch up to a whole number of blocks.
    block_cols = _round_up(block_cols, 128)
    n_aligned = _round_up(max(n, 1), 128)
    block = min(block_cols, n_aligned)
    # v7x megacore: if everything would fit in a single grid step, split into (at least)
    # two "parallel" steps so both TensorCores get work.  Negligible cost on v5e/v6e.
    if block == n_aligned and n_aligned >= 256:
        block = _round_up(-(-n_aligned // 2), 128)
    n_pad = _round_up(n_aligned, block)
    grid = (n_pad // block,)

    # Layout plumbing done once: pad batch columns, biases as columns, weights in
    # PyTorch [out, in] orientation (w4 stays (2, 16) -- no pre-transpose needed).
    y_p = jnp.pad(y_cm.astype(jnp.float32), ((0, 0), (0, n_pad - n)))      # (2, n_pad)
    w1 = params["w1"].astype(jnp.float32)                                   # (16, 2)
    w2 = params["w2"].astype(hidden_dtype)                                  # (16, 16)
    w3 = params["w3"].astype(hidden_dtype)                                  # (16, 16)
    w4 = params["w4"].astype(hidden_dtype)                                  # (2, 16)
    b1 = params["b1"].astype(jnp.float32).reshape(-1, 1)                    # (16, 1)
    b2 = params["b2"].astype(jnp.float32).reshape(-1, 1)                    # (16, 1)
    b3 = params["b3"].astype(jnp.float32).reshape(-1, 1)                    # (16, 1)
    b4 = params["b4"].astype(jnp.float32).reshape(-1, 1)                    # (2, 1)

    col_map = lambda i: (0, i)        # batch tiles move along lanes
    const_map = lambda i: (0, 0)      # weights/biases: same block every step -> resident
    full = lambda arr: pl.BlockSpec(arr.shape, const_map)

    out_cm = pl.pallas_call(
        _mlp_kernel,
        out_shape=jax.ShapeDtypeStruct((2, n_pad), jnp.float32),
        grid_spec=pltpu.PrefetchScalarGridSpec(
            num_scalar_prefetch=0,
            grid=grid,
            in_specs=[
                pl.BlockSpec((2, block), col_map),
                full(w1), full(b1),
                full(w2), full(b2),
                full(w3), full(b3),
                full(w4), full(b4),
            ],
            out_specs=pl.BlockSpec((2, block), col_map),
        ),
        compiler_params=pltpu.CompilerParams(
            dimension_semantics=("parallel",),
            vmem_limit_bytes=32 * 1024 * 1024,   # explicit: v5e scoped default is 16 MiB
        ),
    )(y_p, w1, b1, w2, b2, w3, b3, w4, b4)

    return out_cm[:, :n]


@functools.partial(jax.jit, static_argnames=("block_cols", "hidden_dtype"))
def dudt_forward(t, y, params, *, block_cols=32768, hidden_dtype=jnp.float32):
    """PyTorch-facing layout: y [N, 2] -> [N, 2].  t is ignored.

    The two transposes here are whole-batch HBM relayouts; callers that can keep
    (2, N) layout across calls should use dudt_forward_colmajor directly.
    """
    out_cm = dudt_forward_colmajor(t, y.astype(jnp.float32).T, params,
                                   block_cols=block_cols, hidden_dtype=hidden_dtype)
    return out_cm.T


def init_params(key):
    """nn.Linear-style init (U(-1/sqrt(fan_in), +1/sqrt(fan_in))), PyTorch layout."""
    sizes = [(2, 16), (16, 16), (16, 16), (16, 2)]   # (fan_in, fan_out)
    params = {}
    keys = jax.random.split(key, 2 * len(sizes))
    for i, (fin, fout) in enumerate(sizes):
        bound = 1.0 / (float(fin) ** 0.5)
        w = jax.random.uniform(keys[2 * i], (fout, fin),
                               minval=-bound, maxval=bound, dtype=jnp.float32)
        b = jax.random.uniform(keys[2 * i + 1], (fout,),
                               minval=-bound, maxval=bound, dtype=jnp.float32)
        params[f"w{i + 1}"] = w
        params[f"b{i + 1}"] = b
    return params


def reference_forward(t, y, params):
    del t
    h = jnp.tanh(y @ params["w1"].T + params["b1"])
    h = jnp.tanh(h @ params["w2"].T + params["b2"])
    h = jnp.tanh(h @ params["w3"].T + params["b3"])
    return h @ params["w4"].T + params["b4"]


if __name__ == "__main__":
    key = jax.random.PRNGKey(0)
    kp, ky, ky2 = jax.random.split(key, 3)
    params = init_params(kp)
    t = jnp.float32(0.0)  # ignored, as in the PyTorch module

    # Small ODE-state batch (arbitrary N supported via padding).
    n = 8
    y = jax.random.normal(ky, (n, 2), dtype=jnp.float32)
    out = jax.block_until_ready(dudt_forward(t, y, params))
    ref = reference_forward(t, y, params)
    assert out.shape == (n, 2)
    assert jnp.allclose(out, ref, atol=1e-5, rtol=1e-5)

    # A batch that exercises padding and the >= 2-step ("both v7x TCs") grid path.
    n2 = 300
    y2 = jax.random.normal(ky2, (n2, 2), dtype=jnp.float32)
    out2 = jax.block_until_ready(dudt_forward(t, y2, params))
    ref2 = reference_forward(t, y2, params)
    assert out2.shape == (n2, 2)
    assert jnp.allclose(out2, ref2, atol=1e-5, rtol=1e-5)

    # bf16 hidden activations: only worthwhile (and only exercised) on v6e/v7x,
    # where the VPU/EUP have a bf16 fast path.  Looser tolerance is expected.
    kind = jax.devices()[0].device_kind.lower()
    if ("v6" in kind) or ("v7" in kind):
        out_bf16 = jax.block_until_ready(
            dudt_forward(t, y, params, hidden_dtype=jnp.bfloat16))
        assert jnp.allclose(out_bf16, ref, atol=1e-1, rtol=1e-1)

    print("KERNEL_OK")
</pallas_src>

<mosaic_0001>
module attributes {stable_mosaic.version = 11 : i64} {
  func.func @_mlp_kernel(%arg0: i32, %arg1: memref<2x128xf32, #tpu.memory_space<vmem>>, %arg2: memref<16x2xf32, #tpu.memory_space<vmem>>, %arg3: memref<16x1xf32, #tpu.memory_space<vmem>>, %arg4: memref<16x16xf32, #tpu.memory_space<vmem>>, %arg5: memref<16x1xf32, #tpu.memory_space<vmem>>, %arg6: memref<16x16xf32, #tpu.memory_space<vmem>>, %arg7: memref<16x1xf32, #tpu.memory_space<vmem>>, %arg8: memref<2x16xf32, #tpu.memory_space<vmem>>, %arg9: memref<2x1xf32, #tpu.memory_space<vmem>>, %arg10: memref<2x128xf32, #tpu.memory_space<vmem>>) attributes {dimension_semantics = [#tpu.dimension_semantics<parallel>], iteration_bounds = array<i64: 1>, scalar_prefetch = 0 : i64, scratch_operands = 0 : i64, tpu.core_type = #tpu.core_type<tc>, window_params = [{transform_indices = @transform_0, window_bounds = array<i64: 2, 128>}, {pipeline_mode = #tpu.pipeline_mode<synchronous>, transform_indices = @transform_1, window_bounds = array<i64: 16, 2>}, {pipeline_mode = #tpu.pipeline_mode<synchronous>, transform_indices = @transform_2, window_bounds = array<i64: 16, 1>}, {pipeline_mode = #tpu.pipeline_mode<synchronous>, transform_indices = @transform_3, window_bounds = array<i64: 16, 16>}, {pipeline_mode = #tpu.pipeline_mode<synchronous>, transform_indices = @transform_4, window_bounds = array<i64: 16, 1>}, {pipeline_mode = #tpu.pipeline_mode<synchronous>, transform_indices = @transform_5, window_bounds = array<i64: 16, 16>}, {pipeline_mode = #tpu.pipeline_mode<synchronous>, transform_indices = @transform_6, window_bounds = array<i64: 16, 1>}, {pipeline_mode = #tpu.pipeline_mode<synchronous>, transform_indices = @transform_7, window_bounds = array<i64: 2, 16>}, {pipeline_mode = #tpu.pipeline_mode<synchronous>, transform_indices = @transform_8, window_bounds = array<i64: 2, 1>}, {transform_indices = @transform_9, window_bounds = array<i64: 2, 128>}]} {
    %c0 = arith.constant 0 : index
    %c0_0 = arith.constant 0 : index
    %0 = vector.load %arg1[%c0, %c0_0] : memref<2x128xf32, #tpu.memory_space<vmem>>, vector<2x128xf32>
    %c0_1 = arith.constant 0 : index
    %c0_2 = arith.constant 0 : index
    %1 = vector.load %arg2[%c0_1, %c0_2] : memref<16x2xf32, #tpu.memory_space<vmem>>, vector<16x2xf32>
    %cst = arith.constant dense<0.000000e+00> : vector<16x128xf32>
    %2 = tpu.matmul %1, %0, %cst {dimension_numbers = #tpu.dot_dimension_numbers<[1], [0], [0], [1], [0, 0, 1, 1], [], []>} : vector<16x2xf32>, vector<2x128xf32>, vector<16x128xf32> -> vector<16x128xf32>
    %c0_3 = arith.constant 0 : index
    %c0_4 = arith.constant 0 : index
    %3 = vector.load %arg3[%c0_3, %c0_4] : memref<16x1xf32, #tpu.memory_space<vmem>>, vector<16x1xf32>
    %4 = vector.broadcast %3 : vector<16x1xf32> to vector<16x128xf32>
    %5 = arith.addf %2, %4 : vector<16x128xf32>
    %6 = math.tanh %5 : vector<16x128xf32>
    %c0_5 = arith.constant 0 : index
    %c0_6 = arith.constant 0 : index
    %7 = vector.load %arg4[%c0_5, %c0_6] : memref<16x16xf32, #tpu.memory_space<vmem>>, vector<16x16xf32>
    %cst_7 = arith.constant dense<0.000000e+00> : vector<16x128xf32>
    %8 = tpu.matmul %7, %6, %cst_7 {dimension_numbers = #tpu.dot_dimension_numbers<[1], [0], [0], [1], [0, 0, 1, 1], [], []>} : vector<16x16xf32>, vector<16x128xf32>, vector<16x128xf32> -> vector<16x128xf32>
    %c0_8 = arith.constant 0 : index
    %c0_9 = arith.constant 0 : index
    %9 = vector.load %arg5[%c0_8, %c0_9] : memref<16x1xf32, #tpu.memory_space<vmem>>, vector<16x1xf32>
    %10 = vector.broadcast %9 : vector<16x1xf32> to vector<16x128xf32>
    %11 = arith.addf %8, %10 : vector<16x128xf32>
    %12 = math.tanh %11 : vector<16x128xf32>
    %c0_10 = arith.constant 0 : index
    %c0_11 = arith.constant 0 : index
    %13 = vector.load %arg6[%c0_10, %c0_11] : memref<16x16xf32, #tpu.memory_space<vmem>>, vector<16x16xf32>
    %cst_12 = arith.constant dense<0.000000e+00> : vector<16x128xf32>
    %14 = tpu.matmul %13, %12, %cst_12 {dimension_numbers = #tpu.dot_dimension_numbers<[1], [0], [0], [1], [0, 0, 1, 1], [], []>} : vector<16x16xf32>, vector<16x128xf32>, vector<16x128xf32> -> vector<16x128xf32>
    %c0_13 = arith.constant 0 : index
    %c0_14 = arith.constant 0 : index
    %15 = vector.load %arg7[%c0_13, %c0_14] : memref<16x1xf32, #tpu.memory_space<vmem>>, vector<16x1xf32>
    %16 = vector.broadcast %15 : vector<16x1xf32> to vector<16x128xf32>
    %17 = arith.addf %14, %16 : vector<16x128xf32>
    %18 = math.tanh %17 : vector<16x128xf32>
    %c0_15 = arith.constant 0 : index
    %c0_16 = arith.constant 0 : index
    %19 = vector.load %arg8[%c0_15, %c0_16] : memref<2x16xf32, #tpu.memory_space<vmem>>, vector<2x16xf32>
    %cst_17 = arith.constant dense<0.000000e+00> : vector<2x128xf32>
    %20 = tpu.matmul %19, %18, %cst_17 {dimension_numbers = #tpu.dot_dimension_numbers<[1], [0], [0], [1], [0, 0, 1, 1], [], []>} : vector<2x16xf32>, vector<16x128xf32>, vector<2x128xf32> -> vector<2x128xf32>
    %c0_18 = arith.constant 0 : index
    %c0_19 = arith.constant 0 : index
    %21 = vector.load %arg9[%c0_18, %c0_19] : memref<2x1xf32, #tpu.memory_space<vmem>>, vector<2x1xf32>
    %22 = vector.broadcast %21 : vector<2x1xf32> to vector<2x128xf32>
    %23 = arith.addf %20, %22 : vector<2x128xf32>
    %c0_20 = arith.constant 0 : index
    %c0_21 = arith.constant 0 : index
    %24 = vector.load %arg10[%c0_20, %c0_21] : memref<2x128xf32, #tpu.memory_space<vmem>>, vector<2x128xf32>
    tpu.vector_store %arg10[%c0_20, %c0_21], %23 {strides = array<i32>} : memref<2x128xf32, #tpu.memory_space<vmem>>, vector<2x128xf32>,
    return
  }
  func.func @transform_0(%arg0: i32) -> (i32, i32) {
    %c0_i32 = arith.constant 0 : i32
    %c0_i32_0 = arith.constant 0 : i32
    return %c0_i32, %arg0 : i32, i32
  }
  func.func @transform_1(%arg0: i32) -> (i32, i32) {
    %c0_i32 = arith.constant 0 : i32
    %c0_i32_0 = arith.constant 0 : i32
    %c0_i32_1 = arith.constant 0 : i32
    return %c0_i32, %c0_i32_0 : i32, i32
  }
  func.func @transform_2(%arg0: i32) -> (i32, i32) {
    %c0_i32 = arith.constant 0 : i32
    %c0_i32_0 = arith.constant 0 : i32
    %c0_i32_1 = arith.constant 0 : i32
    return %c0_i32, %c0_i32_0 : i32, i32
  }
  func.func @transform_3(%arg0: i32) -> (i32, i32) {
    %c0_i32 = arith.constant 0 : i32
    %c0_i32_0 = arith.constant 0 : i32
    %c0_i32_1 = arith.constant 0 : i32
    return %c0_i32, %c0_i32_0 : i32, i32
  }
  func.func @transform_4(%arg0: i32) -> (i32, i32) {
    %c0_i32 = arith.constant 0 : i32
    %c0_i32_0 = arith.constant 0 : i32
    %c0_i32_1 = arith.constant 0 : i32
    return %c0_i32, %c0_i32_0 : i32, i32
  }
  func.func @transform_5(%arg0: i32) -> (i32, i32) {
    %c0_i32 = arith.constant 0 : i32
    %c0_i32_0 = arith.constant 0 : i32
    %c0_i32_1 = arith.constant 0 : i32
    return %c0_i32, %c0_i32_0 : i32, i32
  }
  func.func @transform_6(%arg0: i32) -> (i32, i32) {
    %c0_i32 = arith.constant 0 : i32
    %c0_i32_0 = arith.constant 0 : i32
    %c0_i32_1 = arith.constant 0 : i32
    return %c0_i32, %c0_i32_0 : i32, i32
  }
  func.func @transform_7(%arg0: i32) -> (i32, i32) {
    %c0_i32 = arith.constant 0 : i32
    %c0_i32_0 = arith.constant 0 : i32
    %c0_i32_1 = arith.constant 0 : i32
    return %c0_i32, %c0_i32_0 : i32, i32
  }
  func.func @transform_8(%arg0: i32) -> (i32, i32) {
    %c0_i32 = arith.constant 0 : i32
    %c0_i32_0 = arith.constant 0 : i32
    %c0_i32_1 = arith.constant 0 : i32
    return %c0_i32, %c0_i32_0 : i32, i32
  }
  func.func @transform_9(%arg0: i32) -> (i32, i32) {
    %c0_i32 = arith.constant 0 : i32
    %c0_i32_0 = arith.constant 0 : i32
    return %c0_i32, %arg0 : i32, i32
  }
}

</mosaic_0001>

<llo_original>
// kernel: dudt_forward_colmajor.1
$region0: #{dudt_forward_colmajor.1}
  #allocation0 [shape = 'u32[]', space=smem, size = 0x4, offset = 0x4, fixed_abs, tag = 'smem constant byte address 0x4 - core index']
  #allocation1 [shape = 'u32[144,128]{1,0:T(1,128)}', space=vmem, size = 0x12000, scoped, tag = 'internal scratch']
  %s0 = inlined_call_operand.vmem [shape: f32[2,128], index: 0, kind: input, shape index: {}]
  %s1 = inlined_call_operand.vmem [shape: f32[16,2], index: 1, kind: input, shape index: {}]
  %s2 = inlined_call_operand.vmem [shape: f32[16,1], index: 2, kind: input, shape index: {}]
  %s3 = inlined_call_operand.vmem [shape: f32[16,16], index: 3, kind: input, shape index: {}]
  %s4 = inlined_call_operand.vmem [shape: f32[16,1], index: 4, kind: input, shape index: {}]
  %s5 = inlined_call_operand.vmem [shape: f32[16,16], index: 5, kind: input, shape index: {}]
  %s6 = inlined_call_operand.vmem [shape: f32[16,1], index: 6, kind: input, shape index: {}]
  %s7 = inlined_call_operand.vmem [shape: f32[2,16], index: 7, kind: input, shape index: {}]
  %s8 = inlined_call_operand.vmem [shape: f32[2,1], index: 8, kind: input, shape index: {}]
  %s9 = inlined_call_operand.hbm [shape: f32[2,128], index: 9, kind: output, shape index: {}]
  %s10 = sld [smem:[#allocation0]]
  $region46: #{dudt_forward_colmajor.1} parent=0
    _
  %s12 = ssub.s32 1, %s10
  %s13 = scalar_select 0, %s12, %s10
  $region1: #{dudt_forward_colmajor.1} parent=0
    #allocation2 [shape = 'u8[1024]{0}', space=vmem, size = 0x400, scoped, tag = 'output window, operand 0, single buffered']
    #allocation3 [shape = 's32[1]{0}', space=sflag, size = 0x4, scoped, tag = 'scoped memory for dudt_forward_colmajor.1']
    %14 = vsyncpa [#allocation3], 0
    // Predicated region
    $region2: #{dudt_forward_colmajor.1} parent=1 // pred_check
      _
    $region3: #{dudt_forward_colmajor.1} parent=1 // pred_check_branch
      %16 = sbr.rel (0) target = $region5
    $region4: #{dudt_forward_colmajor.1} parent=1 // pred_region
      _
    $region5: #{dudt_forward_colmajor.1} parent=1 // pred_fallthru
      _
    // Predicated region
    $region6: #{dudt_forward_colmajor.1} parent=1 // pred_check
      _
    $region7: #{dudt_forward_colmajor.1} parent=1 // pred_check_branch
      %18 = sbr.rel (0) target = $region9
    $region8: #{dudt_forward_colmajor.1} parent=1 // pred_region
      _
    $region9: #{dudt_forward_colmajor.1} parent=1 // pred_fallthru
      _
    // Predicated region
    $region10: #{dudt_forward_colmajor.1} parent=1 // pred_check
      _
    $region11: #{dudt_forward_colmajor.1} parent=1 // pred_check_branch
      %20 = sbr.rel (0) target = $region13
    $region12: #{dudt_forward_colmajor.1} parent=1 // pred_region
      _
    $region13: #{dudt_forward_colmajor.1} parent=1 // pred_fallthru
      _
    // Predicated region
    $region14: #{dudt_forward_colmajor.1} parent=1 // pred_check
      _
    $region15: #{dudt_forward_colmajor.1} parent=1 // pred_check_branch
      %22 = sbr.rel (0) target = $region17
    $region16: #{dudt_forward_colmajor.1} parent=1 // pred_region
      _
    $region17: #{dudt_forward_colmajor.1} parent=1 // pred_fallthru
      _
    // Predicated region
    $region18: #{dudt_forward_colmajor.1} parent=1 // pred_check
      _
    $region19: #{dudt_forward_colmajor.1} parent=1 // pred_check_branch
      %24 = sbr.rel (0) target = $region21
    $region20: #{dudt_forward_colmajor.1} parent=1 // pred_region
      _
    $region21: #{dudt_forward_colmajor.1} parent=1 // pred_fallthru
      _
    // Predicated region
    $region22: #{dudt_forward_colmajor.1} parent=1 // pred_check
      _
    $region23: #{dudt_forward_colmajor.1} parent=1 // pred_check_branch
      %26 = sbr.rel (0) target = $region25
    $region24: #{dudt_forward_colmajor.1} parent=1 // pred_region
      _
    $region25: #{dudt_forward_colmajor.1} parent=1 // pred_fallthru
      _
    // Predicated region
    $region26: #{dudt_forward_colmajor.1} parent=1 // pred_check
      _
    $region27: #{dudt_forward_colmajor.1} parent=1 // pred_check_branch
      %28 = sbr.rel (0) target = $region29
    $region28: #{dudt_forward_colmajor.1} parent=1 // pred_region
      _
    $region29: #{dudt_forward_colmajor.1} parent=1 // pred_fallthru
      _
    // Predicated region
    $region30: #{dudt_forward_colmajor.1} parent=1 // pred_check
      _
    $region31: #{dudt_forward_colmajor.1} parent=1 // pred_check_branch
      %30 = sbr.rel (0) target = $region33
    $region32: #{dudt_forward_colmajor.1} parent=1 // pred_region
      _
    $region33: #{dudt_forward_colmajor.1} parent=1 // pred_fallthru
      _
    // Predicated region
    $region34: #{dudt_forward_colmajor.1} parent=1 // pred_check
      _
    $region35: #{dudt_forward_colmajor.1} parent=1 // pred_check_branch
      %32 = sbr.rel (0) target = $region37
    $region36: #{dudt_forward_colmajor.1} parent=1 // pred_region
      _
    $region37: #{dudt_forward_colmajor.1} parent=1 // pred_fallthru
      _
    %v33 = vld [vmem:[%s0] sm:$0x3]
    %v34 = vld [vmem:[%s1] sm:$0xff]
    %v35 = vld [vmem:[%s1 + $0x8] sm:$0xff]
    %v36 = vld [vmem:[%s2] sm:$0xff]
    %v37 = vld [vmem:[%s2 + $0x8] sm:$0xff]
    %39 = vset.pattern.permute.xlu0 0
    %40 = vperm.xlu0 %39, %v36
    %v41 = vpop.permute.xlu0 %40
    %44 = vset.pattern.permute.xlu0 0
    %45 = vperm.xlu0 %44, %v37
    %v46 = vpop.permute.xlu0 %45
    %vm48 = vcmask 15360
    %v50 = vsel %vm48, %v34, 0
    %v53 = vsel %vm48, %v35, 0
    %vm55 = vcmask 1041408
    %v57 = vsel %vm55, %v33, 0
    %59 = vmatprep.subr.mxu0 0.0
    %60 = vmatpush1.msra.mxu0 %v57
    %61 = vmatprep.subr.mxu0 0.0
    %62 = vmatpush1.msra.mxu0 0.0
    %63 = vmatprep.subr.mxu0 0.0
    %64 = vmatpush1.msra.mxu0 0.0
    %65 = vmatprep.subr.mxu0 0.0
    %66 = vmatpush1.msra.mxu0 0.0
    %67 = vmatprep.subr.mxu0 0.0
    %68 = vmatpush1.msra.mxu0 0.0
    %69 = vmatprep.subr.mxu0 0.0
    %70 = vmatpush1.msra.mxu0 0.0
    %71 = vmatprep.subr.mxu0 0.0
    %72 = vmatpush1.msra.mxu0 0.0
    %73 = vmatprep.subr.mxu0 0.0
    %74 = vmatpush1.msra.mxu0 0.0
    %75 = vmatprep.subr.mxu0 0.0
    %76 = vmatpush1.msra.mxu0 0.0
    %77 = vmatprep.subr.mxu0 0.0
    %78 = vmatpush1.msra.mxu0 0.0
    %79 = vmatprep.subr.mxu0 0.0
    %80 = vmatpush1.msra.mxu0 0.0
    %81 = vmatprep.subr.mxu0 0.0
    %82 = vmatpush1.msra.mxu0 0.0
    %83 = vmatprep.subr.mxu0 0.0
    %84 = vmatpush1.msra.mxu0 0.0
    %85 = vmatprep.subr.mxu0 0.0
    %86 = vmatpush1.msra.mxu0 0.0
    %87 = vmatprep.subr.mxu0 0.0
    %88 = vmatpush1.msra.mxu0 0.0
    %89 = vmatprep.subr.mxu0 0.0
    %90 = vmatpush1.msra.mxu0 0.0
    %91 = vmatprep.subr.mxu0 0.0
    %92 = vmatpush1.msra.mxu0 0.0
    %93 = vmatprep.subr.mxu0 0.0
    %94 = vmatpush1.msra.mxu0 0.0
    %95 = vmatprep.subr.mxu0 0.0
    %96 = vmatpush1.msra.mxu0 0.0
    %97 = vmatprep.subr.mxu0 0.0
    %98 = vmatpush1.msra.mxu0 0.0
    %99 = vmatprep.subr.mxu0 0.0
    %100 = vmatpush1.msra.mxu0 0.0
    %101 = vmatprep.subr.mxu0 0.0
    %102 = vmatpush1.msra.mxu0 0.0
    %103 = vmatprep.subr.mxu0 0.0
    %104 = vmatpush1.msra.mxu0 0.0
    %105 = vmatprep.subr.mxu0 0.0
    %106 = vmatpush1.msra.mxu0 0.0
    %107 = vmatprep.subr.mxu0 0.0
    %108 = vmatpush1.msra.mxu0 0.0
    %109 = vmatprep.subr.mxu0 0.0
    %110 = vmatpush1.msra.mxu0 0.0
    %111 = vmatprep.subr.mxu0 0.0
    %112 = vmatpush1.msra.mxu0 0.0
    %113 = vmatprep.subr.mxu0 0.0
    %114 = vmatpush1.msra.mxu0 0.0
    %115 = vmatprep.subr.mxu0 0.0
    %116 = vmatpush1.msra.mxu0 0.0
    %117 = vmatprep.subr.mxu0 0.0
    %118 = vmatpush1.msra.mxu0 0.0
    %119 = vmatprep.subr.mxu0 0.0
    %120 = vmatpush1.msra.mxu0 0.0
    %121 = vmatprep.subr.mxu0 0.0
    %122 = vmatpush1.msra.mxu0 0.0
    %123 = vmatprep.mubr.f32.mxu0 0.0
    %124 = vmatmul.mubr.f32.gmra.mrb[0].mxu0 %v50
    %v125 = vpop.f32.mrb[0].mxu0
    %v126 = vadd.f32 %v41, %v125
    %v127 = vpop.f32.mrb[0].mxu0
    %128 = vmatprep.mubr.f32.mxu0 0.0
    %129 = vmatmul.mubr.f32.gmra.mrb[0].mxu0 %v53
    %v130 = vpop.f32.mrb[0].mxu0
    %v131 = vadd.f32 %v46, %v130
    %v132 = vpop.f32.mrb[0].mxu0
    %133 = vdwg.mxu0
    %v134 = vtanh.pop %v126
    %v135 = vtanh.pop %v131
    %v136 = vld [vmem:[%s3] sm:$0xff]
    %v137 = vld [vmem:[%s3 + $0x8] sm:$0xff]
    %v138 = vld [vmem:[%s4] sm:$0xff]
    %v139 = vld [vmem:[%s4 + $0x8] sm:$0xff]
    %141 = vset.pattern.permute.xlu0 0
    %142 = vperm.xlu0 %141, %v138
    %v143 = vpop.permute.xlu0 %142
    %146 = vset.pattern.permute.xlu0 0
    %147 = vperm.xlu0 %146, %v139
    %v148 = vpop.permute.xlu0 %147
    %vm150 = vcmask 130048
    %v152 = vsel %vm150, %v136, 0
    %v155 = vsel %vm150, %v137, 0
    %157 = vmatprep.subr.mxu0 0.0
    %158 = vmatpush1.msra.mxu0 %v134
    %159 = vmatprep.subr.mxu0 0.0
    %160 = vmatpush1.msra.mxu0 %v135
    %161 = vmatprep.subr.mxu0 0.0
    %162 = vmatpush1.msra.mxu0 0.0
    %163 = vmatprep.subr.mxu0 0.0
    %164 = vmatpush1.msra.mxu0 0.0
    %165 = vmatprep.subr.mxu0 0.0
    %166 = vmatpush1.msra.mxu0 0.0
    %167 = vmatprep.subr.mxu0 0.0
    %168 = vmatpush1.msra.mxu0 0.0
    %169 = vmatprep.subr.mxu0 0.0
    %170 = vmatpush1.msra.mxu0 0.0
    %171 = vmatprep.subr.mxu0 0.0
    %172 = vmatpush1.msra.mxu0 0.0
    %173 = vmatprep.subr.mxu0 0.0
    %174 = vmatpush1.msra.mxu0 0.0
    %175 = vmatprep.subr.mxu0 0.0
    %176 = vmatpush1.msra.mxu0 0.0
    %177 = vmatprep.subr.mxu0 0.0
    %178 = vmatpush1.msra.mxu0 0.0
    %179 = vmatprep.subr.mxu0 0.0
    %180 = vmatpush1.msra.mxu0 0.0
    %181 = vmatprep.subr.mxu0 0.0
    %182 = vmatpush1.msra.mxu0 0.0
    %183 = vmatprep.subr.mxu0 0.0
    %184 = vmatpush1.msra.mxu0 0.0
    %185 = vmatprep.subr.mxu0 0.0
    %186 = vmatpush1.msra.mxu0 0.0
    %187 = vmatprep.subr.mxu0 0.0
    %188 = vmatpush1.msra.mxu0 0.0
    %189 = vmatprep.subr.mxu0 0.0
    %190 = vmatpush1.msra.mxu0 0.0
    %191 = vmatprep.subr.mxu0 0.0
    %192 = vmatpush1.msra.mxu0 0.0
    %193 = vmatprep.subr.mxu0 0.0
    %194 = vmatpush1.msra.mxu0 0.0
    %195 = vmatprep.subr.mxu0 0.0
    %196 = vmatpush1.msra.mxu0 0.0
    %197 = vmatprep.subr.mxu0 0.0
    %198 = vmatpush1.msra.mxu0 0.0
    %199 = vmatprep.subr.mxu0 0.0
    %200 = vmatpush1.msra.mxu0 0.0
    %201 = vmatprep.subr.mxu0 0.0
    %202 = vmatpush1.msra.mxu0 0.0
    %203 = vmatprep.subr.mxu0 0.0
    %204 = vmatpush1.msra.mxu0 0.0
    %205 = vmatprep.subr.mxu0 0.0
    %206 = vmatpush1.msra.mxu0 0.0
    %207 = vmatprep.subr.mxu0 0.0
    %208 = vmatpush1.msra.mxu0 0.0
    %209 = vmatprep.subr.mxu0 0.0
    %210 = vmatpush1.msra.mxu0 0.0
    %211 = vmatprep.subr.mxu0 0.0
    %212 = vmatpush1.msra.mxu0 0.0
    %213 = vmatprep.subr.mxu0 0.0
    %214 = vmatpush1.msra.mxu0 0.0
    %215 = vmatprep.subr.mxu0 0.0
    %216 = vmatpush1.msra.mxu0 0.0
    %217 = vmatprep.subr.mxu0 0.0
    %218 = vmatpush1.msra.mxu0 0.0
    %219 = vmatprep.subr.mxu0 0.0
    %220 = vmatpush1.msra.mxu0 0.0
    %221 = vmatprep.mubr.f32.mxu0 0.0
    %222 = vmatmul.mubr.f32.gmra.mrb[0].mxu0 %v152
    %v223 = vpop.f32.mrb[0].mxu0
    %v224 = vadd.f32 %v143, %v223
    %v225 = vpop.f32.mrb[0].mxu0
    %226 = vmatprep.mubr.f32.mxu0 0.0
    %227 = vmatmul.mubr.f32.gmra.mrb[0].mxu0 %v155
    %v228 = vpop.f32.mrb[0].mxu0
    %v229 = vadd.f32 %v148, %v228
    %v230 = vpop.f32.mrb[0].mxu0
    %231 = vdwg.mxu0
    %v232 = vtanh.pop %v224
    %v233 = vtanh.pop %v229
    %v234 = vld [vmem:[%s5] sm:$0xff]
    %v235 = vld [vmem:[%s5 + $0x8] sm:$0xff]
    %v236 = vld [vmem:[%s6] sm:$0xff]
    %v237 = vld [vmem:[%s6 + $0x8] sm:$0xff]
    %239 = vset.pattern.permute.xlu0 0
    %240 = vperm.xlu0 %239, %v236
    %v241 = vpop.permute.xlu0 %240
    %244 = vset.pattern.permute.xlu0 0
    %245 = vperm.xlu0 %244, %v237
    %v246 = vpop.permute.xlu0 %245
    %v249 = vsel %vm150, %v234, 0
    %v252 = vsel %vm150, %v235, 0
    %254 = vmatprep.subr.mxu0 0.0
    %255 = vmatpush1.msra.mxu0 %v232
    %256 = vmatprep.subr.mxu0 0.0
    %257 = vmatpush1.msra.mxu0 %v233
    %258 = vmatprep.subr.mxu0 0.0
    %259 = vmatpush1.msra.mxu0 0.0
    %260 = vmatprep.subr.mxu0 0.0
    %261 = vmatpush1.msra.mxu0 0.0
    %262 = vmatprep.subr.mxu0 0.0
    %263 = vmatpush1.msra.mxu0 0.0
    %264 = vmatprep.subr.mxu0 0.0
    %265 = vmatpush1.msra.mxu0 0.0
    %266 = vmatprep.subr.mxu0 0.0
    %267 = vmatpush1.msra.mxu0 0.0
    %268 = vmatprep.subr.mxu0 0.0
    %269 = vmatpush1.msra.mxu0 0.0
    %270 = vmatprep.subr.mxu0 0.0
    %271 = vmatpush1.msra.mxu0 0.0
    %272 = vmatprep.subr.mxu0 0.0
    %273 = vmatpush1.msra.mxu0 0.0
    %274 = vmatprep.subr.mxu0 0.0
    %275 = vmatpush1.msra.mxu0 0.0
    %276 = vmatprep.subr.mxu0 0.0
    %277 = vmatpush1.msra.mxu0 0.0
    %278 = vmatprep.subr.mxu0 0.0
    %279 = vmatpush1.msra.mxu0 0.0
    %280 = vmatprep.subr.mxu0 0.0
    %281 = vmatpush1.msra.mxu0 0.0
    %282 = vmatprep.subr.mxu0 0.0
    %283 = vmatpush1.msra.mxu0 0.0
    %284 = vmatprep.subr.mxu0 0.0
    %285 = vmatpush1.msra.mxu0 0.0
    %286 = vmatprep.subr.mxu0 0.0
    %287 = vmatpush1.msra.mxu0 0.0
    %288 = vmatprep.subr.mxu0 0.0
    %289 = vmatpush1.msra.mxu0 0.0
    %290 = vmatprep.subr.mxu0 0.0
    %291 = vmatpush1.msra.mxu0 0.0
    %292 = vmatprep.subr.mxu0 0.0
    %293 = vmatpush1.msra.mxu0 0.0
    %294 = vmatprep.subr.mxu0 0.0
    %295 = vmatpush1.msra.mxu0 0.0
    %296 = vmatprep.subr.mxu0 0.0
    %297 = vmatpush1.msra.mxu0 0.0
    %298 = vmatprep.subr.mxu0 0.0
    %299 = vmatpush1.msra.mxu0 0.0
    %300 = vmatprep.subr.mxu0 0.0
    %301 = vmatpush1.msra.mxu0 0.0
    %302 = vmatprep.subr.mxu0 0.0
    %303 = vmatpush1.msra.mxu0 0.0
    %304 = vmatprep.subr.mxu0 0.0
    %305 = vmatpush1.msra.mxu0 0.0
    %306 = vmatprep.subr.mxu0 0.0
    %307 = vmatpush1.msra.mxu0 0.0
    %308 = vmatprep.subr.mxu0 0.0
    %309 = vmatpush1.msra.mxu0 0.0
    %310 = vmatprep.subr.mxu0 0.0
    %311 = vmatpush1.msra.mxu0 0.0
    %312 = vmatprep.subr.mxu0 0.0
    %313 = vmatpush1.msra.mxu0 0.0
    %314 = vmatprep.subr.mxu0 0.0
    %315 = vmatpush1.msra.mxu0 0.0
    %316 = vmatprep.subr.mxu0 0.0
    %317 = vmatpush1.msra.mxu0 0.0
    %318 = vmatprep.mubr.f32.mxu0 0.0
    %319 = vmatmul.mubr.f32.gmra.mrb[0].mxu0 %v249
    %v320 = vpop.f32.mrb[0].mxu0
    %v321 = vadd.f32 %v241, %v320
    %v322 = vpop.f32.mrb[0].mxu0
    %323 = vmatprep.mubr.f32.mxu0 0.0
    %324 = vmatmul.mubr.f32.gmra.mrb[0].mxu0 %v252
    %v325 = vpop.f32.mrb[0].mxu0
    %v326 = vadd.f32 %v246, %v325
    %v327 = vpop.f32.mrb[0].mxu0
    %328 = vdwg.mxu0
    %v329 = vtanh.pop %v321
    %v330 = vtanh.pop %v326
    %v331 = vld [vmem:[%s7] sm:$0x3]
    %v332 = vld [vmem:[%s8] sm:$0x3]
    %334 = vset.pattern.permute.xlu0 0
    %335 = vperm.xlu0 %334, %v332
    %v336 = vpop.permute.xlu0 %335
    %v339 = vsel %vm150, %v331, 0
    %341 = vmatprep.subr.mxu0 0.0
    %342 = vmatpush1.msra.mxu0 %v329
    %343 = vmatprep.subr.mxu0 0.0
    %344 = vmatpush1.msra.mxu0 %v330
    %345 = vmatprep.subr.mxu0 0.0
    %346 = vmatpush1.msra.mxu0 0.0
    %347 = vmatprep.subr.mxu0 0.0
    %348 = vmatpush1.msra.mxu0 0.0
    %349 = vmatprep.subr.mxu0 0.0
    %350 = vmatpush1.msra.mxu0 0.0
    %351 = vmatprep.subr.mxu0 0.0
    %352 = vmatpush1.msra.mxu0 0.0
    %353 = vmatprep.subr.mxu0 0.0
    %354 = vmatpush1.msra.mxu0 0.0
    %355 = vmatprep.subr.mxu0 0.0
    %356 = vmatpush1.msra.mxu0 0.0
    %357 = vmatprep.subr.mxu0 0.0
    %358 = vmatpush1.msra.mxu0 0.0
    %359 = vmatprep.subr.mxu0 0.0
    %360 = vmatpush1.msra.mxu0 0.0
    %361 = vmatprep.subr.mxu0 0.0
    %362 = vmatpush1.msra.mxu0 0.0
    %363 = vmatprep.subr.mxu0 0.0
    %364 = vmatpush1.msra.mxu0 0.0
    %365 = vmatprep.subr.mxu0 0.0
    %366 = vmatpush1.msra.mxu0 0.0
    %367 = vmatprep.subr.mxu0 0.0
    %368 = vmatpush1.msra.mxu0 0.0
    %369 = vmatprep.subr.mxu0 0.0
    %370 = vmatpush1.msra.mxu0 0.0
    %371 = vmatprep.subr.mxu0 0.0
    %372 = vmatpush1.msra.mxu0 0.0
    %373 = vmatprep.subr.mxu0 0.0
    %374 = vmatpush1.msra.mxu0 0.0
    %375 = vmatprep.subr.mxu0 0.0
    %376 = vmatpush1.msra.mxu0 0.0
    %377 = vmatprep.subr.mxu0 0.0
    %378 = vmatpush1.msra.mxu0 0.0
    %379 = vmatprep.subr.mxu0 0.0
    %380 = vmatpush1.msra.mxu0 0.0
    %381 = vmatprep.subr.mxu0 0.0
    %382 = vmatpush1.msra.mxu0 0.0
    %383 = vmatprep.subr.mxu0 0.0
    %384 = vmatpush1.msra.mxu0 0.0
    %385 = vmatprep.subr.mxu0 0.0
    %386 = vmatpush1.msra.mxu0 0.0
    %387 = vmatprep.subr.mxu0 0.0
    %388 = vmatpush1.msra.mxu0 0.0
    %389 = vmatprep.subr.mxu0 0.0
    %390 = vmatpush1.msra.mxu0 0.0
    %391 = vmatprep.subr.mxu0 0.0
    %392 = vmatpush1.msra.mxu0 0.0
    %393 = vmatprep.subr.mxu0 0.0
    %394 = vmatpush1.msra.mxu0 0.0
    %395 = vmatprep.subr.mxu0 0.0
    %396 = vmatpush1.msra.mxu0 0.0
    %397 = vmatprep.subr.mxu0 0.0
    %398 = vmatpush1.msra.mxu0 0.0
    %399 = vmatprep.subr.mxu0 0.0
    %400 = vmatpush1.msra.mxu0 0.0
    %401 = vmatprep.subr.mxu0 0.0
    %402 = vmatpush1.msra.mxu0 0.0
    %403 = vmatprep.subr.mxu0 0.0
    %404 = vmatpush1.msra.mxu0 0.0
    %405 = vmatprep.mubr.f32.mxu0 0.0
    %406 = vmatmul.mubr.f32.gmra.mrb[0].mxu0 %v339
    %v407 = vpop.f32.mrb[0].mxu0
    %v408 = vadd.f32 %v336, %v407
    %v409 = vpop.f32.mrb[0].mxu0
    %410 = vdwg.mxu0
    %411 = vst [vmem:[#allocation2] sm:$0x3] %v408
    // Predicated region
    $region38: #{dudt_forward_colmajor.1} parent=1 // pred_check
      _
    $region39: #{dudt_forward_colmajor.1} parent=1 // pred_check_branch
      %413 = sbr.rel (0) target = $region41
    $region40: #{dudt_forward_colmajor.1} parent=1 // pred_region
      %s415 = ssub.s32 32, 32
      %416 = vsyncadd [#allocation3], %s415
      %s418 = sshll.u32 [#allocation2], 4
      %s419 = int_to_ptr.vmem [resolvable:$true] %s418
      %421 = dma.vmem_to_hbm [thread:$0]  %s419, 32, %s9, [#allocation3]
    $region41: #{dudt_forward_colmajor.1} parent=1 // pred_fallthru
      _
    // Predicated region
    $region42: #{dudt_forward_colmajor.1} parent=1 // pred_check
      _
    $region43: #{dudt_forward_colmajor.1} parent=1 // pred_check_branch
      %423 = sbr.rel (0) target = $region45
    $region44: #{dudt_forward_colmajor.1} parent=1 // pred_region
      %424 = dma.done [#allocation3], 32
    $region45: #{dudt_forward_colmajor.1} parent=1 // pred_fallthru
      _
    %425 = vsyncpa [#allocation3], 1

</llo_original>
